<compile_context>
chip_gen: v7x
topology: tpu7x:2x2x1
jax: 0.10.0
libtpu: 0.0.40
codegen_flags: <defaults>
</compile_context>

<pallas_src>
import jax
import jax.numpy as jnp
from jax.experimental import pallas as pl
from jax.experimental.pallas import tpu as pltpu


def _round_up(x, m):
    return ((x + m - 1) // m) * m


def mf_kernel(u_ref, it_ref, o_ref):
    # u_ref, it_ref: (F, TB) gathered embedding tiles
    #                (factor dim on sublanes, batch on lanes).
    # o_ref:         (1, TB) lane-dense per-example dot products.
    # VPU elementwise multiply + short cross-sublane reduce (XLU slot);
    # deliberately no MXU involvement for an F=20 contraction.
    o_ref[...] = jnp.sum(u_ref[...] * it_ref[...], axis=0, keepdims=True)


def matrix_factorization_forward(data, user_w, item_w, *, tb=2048):
    """data:   (B, 2) float array of 1-indexed (user, item) ids.
    user_w: (n_users, F) float32 embedding table.
    item_w: (n_items, F) float32 embedding table.
    Returns (B,) float32 predictions, matching (u * it).sum(dim=1)."""
    B = data.shape[0]
    _, F = user_w.shape

    # ---- Tile selection ---------------------------------------------------
    #  * tb must be a multiple of 128 (lane-dense blocks / output stores).
    #  * cap at 8192 so double-buffered inputs stay well inside v5e's 16 MiB
    #    default scoped-VMEM limit (raise vmem_limit_bytes if pushed past).
    #  * keep >= 2 grid tiles when the batch allows it so the "parallel"
    #    grid axis can shard over both v7x TensorCores.
    tb = min(tb, 8192)
    tb = min(tb, max(128, _round_up(pl.cdiv(B, 2), 128)))
    assert tb % 128 == 0, "batch tile must be a multiple of 128 lanes"

    num_tiles = pl.cdiv(B, tb)
    b_pad = num_tiles * tb

    # ---- Glue (plain JAX / XLA): index prep + embedding gather ------------
    users = data[:, 0].astype(jnp.int32) - 1          # 1-indexed -> 0-indexed
    items = data[:, 1].astype(jnp.int32) - 1
    users = jnp.pad(users, (0, b_pad - B))            # padded slots gather row 0;
    items = jnp.pad(items, (0, b_pad - B))            # their outputs are discarded.

    # Gather from the pre-transposed tables (tables are < 1 MiB, transposed
    # once outside the batch path) so the gathered activations come out
    # (F, B_pad) lane-major with no transpose over the full batch.
    u_t = jnp.take(user_w.T, users, axis=1)           # (F, B_pad)
    it_t = jnp.take(item_w.T, items, axis=1)          # (F, B_pad)

    # TODO(synk): fusing the gather into the kernel (VMEM-resident tables +
    # (1, tb) int32 index blocks) would cut HBM traffic ~25x, but Mosaic's
    # dynamic gather cannot vector-index a ~10K-row VMEM table, so the gather
    # stays on the XLA side of the pallas_call boundary.

    # ---- Pallas: tiled multiply + factor-dim reduce, lane-dense output ----
    out = pl.pallas_call(
        mf_kernel,
        out_shape=jax.ShapeDtypeStruct((1, b_pad), jnp.float32),
        grid=(num_tiles,),
        in_specs=[
            pl.BlockSpec((F, tb), lambda i: (0, i)),
            pl.BlockSpec((F, tb), lambda i: (0, i)),
        ],
        out_specs=pl.BlockSpec((1, tb), lambda i: (0, i)),
        compiler_params=pltpu.CompilerParams(
            dimension_semantics=("parallel",)),   # v7x: shard tiles over 2 TCs
    )(u_t, it_t)

    return out.reshape(b_pad)[:B]                  # matches x.squeeze(1)


if __name__ == "__main__":
    # Module defaults: n_users=610, n_items=9724, n_factors=20
    n_users, n_items, n_factors = 610, 9724, 20

    key = jax.random.PRNGKey(0)
    k_u, k_i = jax.random.split(key)

    # Deterministic init matching .uniform_(-0.05, 0.05)
    user_w = jax.random.uniform(k_u, (n_users, n_factors),
                                dtype=jnp.float32, minval=-0.05, maxval=0.05)
    item_w = jax.random.uniform(k_i, (n_items, n_factors),
                                dtype=jnp.float32, minval=-0.05, maxval=0.05)

    fwd = jax.jit(matrix_factorization_forward)

    # Small demo batch + a multi-tile batch (exercises padding + 2-tile grid).
    for batch in (8, 1000):
        kb = jax.random.fold_in(key, batch)
        k_du, k_di = jax.random.split(kb)
        u_ids = jax.random.randint(k_du, (batch,), 1, n_users + 1)
        i_ids = jax.random.randint(k_di, (batch,), 1, n_items + 1)
        # Synthetic "data": (B, 2) float tensor of 1-indexed (user, item) ids.
        data = jnp.stack([u_ids, i_ids], axis=1).astype(jnp.float32)

        out = jax.block_until_ready(fwd(data, user_w, item_w))

        # Pure-JAX reference for correctness.
        users = data[:, 0].astype(jnp.int32) - 1
        items = data[:, 1].astype(jnp.int32) - 1
        ref = jnp.sum(user_w[users] * item_w[items], axis=1)

        assert out.shape == (batch,), out.shape
        assert jnp.allclose(out, ref, atol=1e-6, rtol=1e-6), (out, ref)

    print("KERNEL_OK")
</pallas_src>

<mosaic_0001>
module attributes {stable_mosaic.version = 11 : i64} {
  func.func @mf_kernel(%arg0: i32, %arg1: memref<20x128xf32, #tpu.memory_space<vmem>>, %arg2: memref<20x128xf32, #tpu.memory_space<vmem>>, %arg3: memref<1x128xf32, #tpu.memory_space<vmem>>) attributes {dimension_semantics = [#tpu.dimension_semantics<parallel>], iteration_bounds = array<i64: 1>, scalar_prefetch = 0 : i64, scratch_operands = 0 : i64, tpu.core_type = #tpu.core_type<tc>, window_params = [{transform_indices = @transform_0, window_bounds = array<i64: 20, 128>}, {transform_indices = @transform_1, window_bounds = array<i64: 20, 128>}, {transform_indices = @transform_2, window_bounds = array<i64: 1, 128>}]} {
    %c0 = arith.constant 0 : index
    %c0_0 = arith.constant 0 : index
    %0 = vector.load %arg1[%c0, %c0_0] : memref<20x128xf32, #tpu.memory_space<vmem>>, vector<20x128xf32>
    %c0_1 = arith.constant 0 : index
    %c0_2 = arith.constant 0 : index
    %1 = vector.load %arg2[%c0_1, %c0_2] : memref<20x128xf32, #tpu.memory_space<vmem>>, vector<20x128xf32>
    %2 = arith.mulf %0, %1 : vector<20x128xf32>
    %cst = arith.constant dense<0.000000e+00> : vector<128xf32>
    %3 = vector.multi_reduction <add>, %2, %cst [0] : vector<20x128xf32> to vector<128xf32>
    %4 = vector.shape_cast %3 : vector<128xf32> to vector<1x128xf32>
    %c0_3 = arith.constant 0 : index
    %c0_4 = arith.constant 0 : index
    %5 = vector.load %arg3[%c0_3, %c0_4] : memref<1x128xf32, #tpu.memory_space<vmem>>, vector<1x128xf32>
    tpu.vector_store %arg3[%c0_3, %c0_4], %4 {strides = array<i32>} : memref<1x128xf32, #tpu.memory_space<vmem>>, vector<1x128xf32>,
    return
  }
  func.func @transform_0(%arg0: i32) -> (i32, i32) {
    %c0_i32 = arith.constant 0 : i32
    %c0_i32_0 = arith.constant 0 : i32
    return %c0_i32, %arg0 : i32, i32
  }
  func.func @transform_1(%arg0: i32) -> (i32, i32) {
    %c0_i32 = arith.constant 0 : i32
    %c0_i32_0 = arith.constant 0 : i32
    return %c0_i32, %arg0 : i32, i32
  }
  func.func @transform_2(%arg0: i32) -> (i32, i32) {
    %c0_i32 = arith.constant 0 : i32
    %c0_i32_0 = arith.constant 0 : i32
    return %c0_i32, %arg0 : i32, i32
  }
}

</mosaic_0001>

<llo_original>
// kernel: matrix_factorization_forward.1
$region0: #{matrix_factorization_forward.1}
  #allocation0 [shape = 'u32[]', space=smem, size = 0x4, offset = 0x4, fixed_abs, tag = 'smem constant byte address 0x4 - core index']
  #allocation1 [shape = 'u32[144,128]{1,0:T(1,128)}', space=vmem, size = 0x12000, scoped, tag = 'internal scratch']
  %s0 = inlined_call_operand.vmem [shape: f32[20,128], index: 0, kind: input, shape index: {}]
  %s1 = inlined_call_operand.vmem [shape: f32[20,128], index: 1, kind: input, shape index: {}]
  %s2 = inlined_call_operand.vmem [shape: f32[1,128], index: 2, kind: output, shape index: {}]
  %s3 = sld [smem:[#allocation0]]
  $region18: #{matrix_factorization_forward.1} parent=0
    _
  %s5 = ssub.s32 1, %s3
  %s6 = scalar_select 0, %s5, %s3
  // Predicated region
  $region2: #{matrix_factorization_forward.1} parent=0 // pred_check
    _
  $region3: #{matrix_factorization_forward.1} parent=0 // pred_check_branch
    %8 = sbr.rel (0) target = $region5
  $region4: #{matrix_factorization_forward.1} parent=0 // pred_region
    _
  $region5: #{matrix_factorization_forward.1} parent=0 // pred_fallthru
    _
  // Predicated region
  $region6: #{matrix_factorization_forward.1} parent=0 // pred_check
    _
  $region7: #{matrix_factorization_forward.1} parent=0 // pred_check_branch
    %10 = sbr.rel (0) target = $region9
  $region8: #{matrix_factorization_forward.1} parent=0 // pred_region
    _
  $region9: #{matrix_factorization_forward.1} parent=0 // pred_fallthru
    _
  %v11 = vld [vmem:[%s0] sm:$0xff]
  %v12 = vld [vmem:[%s0 + $0x8] sm:$0xff]
  %v13 = vld [vmem:[%s0 + $0x10] sm:$0xf]
  %v14 = vld [vmem:[%s1] sm:$0xff]
  %v15 = vld [vmem:[%s1 + $0x8] sm:$0xff]
  %v16 = vld [vmem:[%s1 + $0x10] sm:$0xf]
  %v17 = vmul.f32 %v11, %v14
  %v18 = vmul.f32 %v12, %v15
  %v19 = vmul.f32 %v13, %v16
  %v20 = vadd.f32 %v17, %v18
  %vm21 = vcmask 1043456
  %v22 = vsel %vm21, %v19, 0.0
  %v23 = vadd.f32 %v20, %v22
  %v24 = vrot.slane %v23, 4
  %v25 = vadd.f32 %v23, %v24
  %v26 = vrot.slane %v25, 2
  %v27 = vadd.f32 %v25, %v26
  %v28 = vrot.slane %v27, 1
  %v29 = vadd.f32 %v27, %v28
  %30 = vst [vmem:[%s2] sm:$0x1] %v29
  // Predicated region
  $region10: #{matrix_factorization_forward.1} parent=0 // pred_check
    _
  $region11: #{matrix_factorization_forward.1} parent=0 // pred_check_branch
    %32 = sbr.rel (0) target = $region13
  $region12: #{matrix_factorization_forward.1} parent=0 // pred_region
    _
  $region13: #{matrix_factorization_forward.1} parent=0 // pred_fallthru
    _
  // Predicated region
  $region14: #{matrix_factorization_forward.1} parent=0 // pred_check
    _
  $region15: #{matrix_factorization_forward.1} parent=0 // pred_check_branch
    %34 = sbr.rel (0) target = $region17
  $region16: #{matrix_factorization_forward.1} parent=0 // pred_region
    _
  $region17: #{matrix_factorization_forward.1} parent=0 // pred_fallthru
    _

</llo_original>
